<compile_context>
chip_gen: v6e
topology: v6e:2x2x1
jax: 0.10.0
libtpu: 0.0.40
codegen_flags: <defaults>
</compile_context>

<pallas_src>
import functools

import jax
import jax.numpy as jnp
import numpy as np
from jax.experimental import pallas as pl
from jax.experimental.pallas import tpu as pltpu

C = 384          # fixed by the module
EPS = 1e-5       # nn.InstanceNorm2d default

# divisors of 384 that are multiples of 8 (valid sublane tile sizes)
_C_TILES = (384, 192, 128, 96, 64, 48, 32, 24, 16, 8)


def _film_instnorm_kernel(gamma_ref, fm_ref, out_ref, *, c_tile):
    # gamma_ref: (C, 1) full per-batch gamma, VMEM-resident across the channel
    #            grid axis (block index depends only on the batch axis).
    # fm_ref / out_ref: (c_tile, HW) channel x spatial blocks.
    c = pl.program_id(1)
    start = pl.multiple_of(c * c_tile, c_tile)
    g = gamma_ref[pl.ds(start, c_tile), :]                 # (c_tile, 1)

    x = fm_ref[...]                                        # (c_tile, HW) f32
    mean = jnp.mean(x, axis=1, keepdims=True)              # XLU lane reduce
    centered = x - mean
    var = jnp.mean(centered * centered, axis=1, keepdims=True)
    # out = gamma*(x - mean) / sqrt(gamma^2*var + eps)   (beta cancels exactly)
    scale = g * jax.lax.rsqrt(g * g * var + EPS)           # rsqrt -> EUP
    out_ref[...] = centered * scale


def _vmem_capacity_bytes():
    """Physical VMEM per TensorCore; conservative fallback if unavailable."""
    try:
        cap = getattr(pltpu.get_tpu_info(), "vmem_capacity_bytes", None)
        if cap:
            return int(cap)
    except Exception:
        pass
    return 64 * 1024 * 1024            # v7x per-TC VMEM (smallest generation)


def _pick_c_tile(hw, batch, budget_bytes, min_grid_steps=4):
    """Largest channel tile (divisor of 384, multiple of 8) whose f32
    (c_tile, HW) block fits the per-block VMEM budget, then shrunk (if needed)
    so the all-parallel grid has enough steps to feed both v7x TCs."""
    ct = _C_TILES[-1]
    for cand in _C_TILES:
        if cand * hw * 4 <= budget_bytes:
            ct = cand
            break
    # TODO(synk): for extreme H*W (c_tile=8 block still over budget) a
    # two-pass spatial tiling (sum / centered-sumsq accumulation over an
    # 'arbitrary' HW grid axis) would respect v7x's 64 MiB VMEM more
    # gracefully; here we only cap the per-generation budget.
    while batch * (C // ct) < min_grid_steps:
        smaller = [c for c in _C_TILES if c < ct]
        if not smaller:
            break
        ct = smaller[0]
    return ct


def dense_film_layer(feature_map_nchw, condition_vector, w_h, b_h, w_a, b_a):
    """feature_map_nchw: (B, 384, H, W) f32
       condition_vector: (B, K) f32
       w_h, w_a: (384, K) f32 (PyTorch Linear weight layout); b_h, b_a: (384,)
       returns (B, 384, H, W) f32

       Note: w_a / b_a (the 'addition' Linear) are accepted for interface
       parity but have no effect on the output — InstanceNorm2d(affine=False)
       re-centers, so the additive FiLM term cancels exactly."""
    del w_a, b_a
    B, Cc, H, W = feature_map_nchw.shape
    assert Cc == C
    HW = H * W

    # gamma hoisted out of the kernel: one tiny matmul in XLA.
    gamma = (condition_vector @ w_h.T + b_h).reshape(B, C, 1)

    # NCHW -> (B, C, HW): contiguous reshape, no data movement.  Channels on
    # sublanes, spatial positions on lanes (lane-dense output when HW % 128
    # == 0; non-multiples still compile since the block spans the full HW).
    fm = feature_map_nchw.reshape(B, C, HW)

    vmem_cap = _vmem_capacity_bytes()
    # ~6 MiB blocks on 128-MiB-VMEM chips (v5e/v6e), ~4 MiB on v7x.
    budget = max(2 << 20, min(6 << 20, vmem_cap // 16))
    c_tile = _pick_c_tile(HW, B, budget)

    block_bytes = c_tile * HW * 4
    gamma_bytes = 2 * C * 128 * 4                    # lane-padded, double-buffered
    # 2x in + 2x out double buffers + ~2 full-block temporaries + slack.
    footprint = 6 * block_bytes + gamma_bytes + (2 << 20)
    vmem_limit = int(min(max(footprint, 32 << 20), (vmem_cap * 3) // 4, 96 << 20))

    cost = pl.CostEstimate(
        flops=6 * B * C * HW,
        transcendentals=B * C,
        bytes_accessed=8 * B * C * HW + 8 * B * C,
    )

    out = pl.pallas_call(
        functools.partial(_film_instnorm_kernel, c_tile=c_tile),
        out_shape=jax.ShapeDtypeStruct((B, C, HW), jnp.float32),
        grid=(B, C // c_tile),
        in_specs=[
            # gamma: full (C, 1) per batch; block index constant over the
            # channel axis -> stays VMEM-resident instead of per-step DMA.
            pl.BlockSpec((None, C, 1), lambda b, c: (b, 0, 0)),
            pl.BlockSpec((None, c_tile, HW), lambda b, c: (b, c, 0)),
        ],
        out_specs=pl.BlockSpec((None, c_tile, HW), lambda b, c: (b, c, 0)),
        compiler_params=pltpu.CompilerParams(
            dimension_semantics=("parallel", "parallel"),
            vmem_limit_bytes=vmem_limit),
        cost_estimate=cost,
    )(gamma, fm)

    return out.reshape(B, C, H, W)


def _reference(feature_map, cond, w_h, b_h, w_a, b_a):
    gamma = (cond @ w_h.T + b_h)[:, :, None, None]
    beta = (cond @ w_a.T + b_a)[:, :, None, None]
    y = feature_map * gamma + beta
    mean = jnp.mean(y, axis=(2, 3), keepdims=True)
    var = jnp.mean((y - mean) ** 2, axis=(2, 3), keepdims=True)
    return (y - mean) / jnp.sqrt(var + EPS)


if __name__ == "__main__":
    B, K, H, W = 2, 8, 16, 16   # number_known_classes = 8

    key = jax.random.PRNGKey(0)
    k1, k2, k3, k4, k5, k6 = jax.random.split(key, 6)

    feature_map = jax.random.normal(k1, (B, C, H, W), dtype=jnp.float32)
    cond = jax.random.normal(k2, (B, K), dtype=jnp.float32)

    # Deterministic parameter init (Linear: weight (384, K), bias (384,))
    bound = 1.0 / np.sqrt(K)
    w_h = jax.random.uniform(k3, (C, K), jnp.float32, -bound, bound)
    b_h = jax.random.uniform(k4, (C,), jnp.float32, -bound, bound)
    w_a = jax.random.uniform(k5, (C, K), jnp.float32, -bound, bound)
    b_a = jax.random.uniform(k6, (C,), jnp.float32, -bound, bound)

    out = dense_film_layer(feature_map, cond, w_h, b_h, w_a, b_a)
    out = jax.block_until_ready(out)

    ref = _reference(feature_map, cond, w_h, b_h, w_a, b_a)
    np.testing.assert_allclose(np.asarray(out), np.asarray(ref),
                               rtol=1e-4, atol=1e-4)
    print("KERNEL_OK")
</pallas_src>

<mosaic_0001>
module attributes {stable_mosaic.version = 11 : i64} {
  func.func @_film_instnorm_kernel(%arg0: i32, %arg1: i32, %arg2: memref<1x384x1xf32, #tpu.memory_space<vmem>>, %arg3: memref<1x192x256xf32, #tpu.memory_space<vmem>>, %arg4: memref<1x192x256xf32, #tpu.memory_space<vmem>>) attributes {dimension_semantics = [#tpu.dimension_semantics<parallel>, #tpu.dimension_semantics<parallel>], iteration_bounds = array<i64: 2, 2>, scalar_prefetch = 0 : i64, scratch_operands = 0 : i64, tpu.core_type = #tpu.core_type<tc>, window_params = [{transform_indices = @transform_0, window_bounds = array<i64: 1, 384, 1>}, {transform_indices = @transform_1, window_bounds = array<i64: 1, 192, 256>}, {transform_indices = @transform_2, window_bounds = array<i64: 1, 192, 256>}]} {
    %c192_i32 = arith.constant 192 : i32
    %0 = arith.muli %arg1, %c192_i32 : i32
    %1 = tpu.assume_multiple %0, 192 : i32
    %c0 = arith.constant 0 : index
    %2 = arith.index_cast %1 : i32 to index
    %c0_0 = arith.constant 0 : index
    %3 = vector.load %arg2[%c0, %2, %c0_0] : memref<1x384x1xf32, #tpu.memory_space<vmem>>, vector<1x192x1xf32>
    %4 = vector.shape_cast %3 : vector<1x192x1xf32> to vector<192x1xf32>
    %c0_1 = arith.constant 0 : index
    %c0_2 = arith.constant 0 : index
    %c0_3 = arith.constant 0 : index
    %5 = vector.load %arg3[%c0_1, %c0_2, %c0_3] : memref<1x192x256xf32, #tpu.memory_space<vmem>>, vector<1x192x256xf32>
    %6 = vector.shape_cast %5 : vector<1x192x256xf32> to vector<192x256xf32>
    %cst = arith.constant dense<0.000000e+00> : vector<192xf32>
    %7 = vector.multi_reduction <add>, %6, %cst [1] : vector<192x256xf32> to vector<192xf32>
    %8 = vector.shape_cast %7 : vector<192xf32> to vector<192x1xf32>
    %cst_4 = arith.constant 2.560000e+02 : f32
    %9 = vector.broadcast %cst_4 : f32 to vector<192x1xf32>
    %10 = arith.divf %8, %9 : vector<192x1xf32>
    %11 = vector.broadcast %10 : vector<192x1xf32> to vector<192x256xf32>
    %12 = arith.subf %6, %11 : vector<192x256xf32>
    %13 = arith.mulf %12, %12 : vector<192x256xf32>
    %cst_5 = arith.constant dense<0.000000e+00> : vector<192xf32>
    %14 = vector.multi_reduction <add>, %13, %cst_5 [1] : vector<192x256xf32> to vector<192xf32>
    %15 = vector.shape_cast %14 : vector<192xf32> to vector<192x1xf32>
    %cst_6 = arith.constant 2.560000e+02 : f32
    %16 = vector.broadcast %cst_6 : f32 to vector<192x1xf32>
    %17 = arith.divf %15, %16 : vector<192x1xf32>
    %18 = arith.mulf %4, %4 : vector<192x1xf32>
    %19 = arith.mulf %18, %17 : vector<192x1xf32>
    %cst_7 = arith.constant 9.99999974E-6 : f32
    %20 = vector.broadcast %cst_7 : f32 to vector<192x1xf32>
    %21 = arith.addf %19, %20 : vector<192x1xf32>
    %22 = math.rsqrt %21 : vector<192x1xf32>
    %23 = arith.mulf %4, %22 : vector<192x1xf32>
    %24 = vector.broadcast %23 : vector<192x1xf32> to vector<192x256xf32>
    %25 = arith.mulf %12, %24 : vector<192x256xf32>
    %c0_8 = arith.constant 0 : index
    %c0_9 = arith.constant 0 : index
    %c0_10 = arith.constant 0 : index
    %26 = vector.load %arg4[%c0_8, %c0_9, %c0_10] : memref<1x192x256xf32, #tpu.memory_space<vmem>>, vector<1x192x256xf32>
    %27 = vector.shape_cast %26 : vector<1x192x256xf32> to vector<192x256xf32>
    %28 = vector.shape_cast %25 : vector<192x256xf32> to vector<1x192x256xf32>
    tpu.vector_store %arg4[%c0_8, %c0_9, %c0_10], %28 {strides = array<i32>} : memref<1x192x256xf32, #tpu.memory_space<vmem>>, vector<1x192x256xf32>,
    return
  }
  func.func @transform_0(%arg0: i32, %arg1: i32) -> (i32, i32, i32) {
    %c0_i32 = arith.constant 0 : i32
    %c0_i32_0 = arith.constant 0 : i32
    %c0_i32_1 = arith.constant 0 : i32
    return %arg0, %c0_i32, %c0_i32_0 : i32, i32, i32
  }
  func.func @transform_1(%arg0: i32, %arg1: i32) -> (i32, i32, i32) {
    %c0_i32 = arith.constant 0 : i32
    %c0_i32_0 = arith.constant 0 : i32
    return %arg0, %arg1, %c0_i32 : i32, i32, i32
  }
  func.func @transform_2(%arg0: i32, %arg1: i32) -> (i32, i32, i32) {
    %c0_i32 = arith.constant 0 : i32
    %c0_i32_0 = arith.constant 0 : i32
    return %arg0, %arg1, %c0_i32 : i32, i32, i32
  }
}

</mosaic_0001>

<llo_original>
// kernel: tpu_custom_call.1
$region0: #{tpu_custom_call.1}
  #allocation0 [shape = 'u32[]', space=smem, size = 0x4, offset = 0x4, fixed_abs, tag = 'smem constant byte address 0x4 - core index']
  #allocation1 [shape = 'u32[144,128]{1,0:T(1,128)}', space=vmem, size = 0x12000, scoped, tag = 'internal scratch']
  %s0 = inlined_call_operand.vmem [shape: f32[2,384,1], index: 0, kind: input, shape index: {}]
  %s1 = inlined_call_operand.hbm [shape: f32[2,384,256], index: 1, kind: input, shape index: {}]
  %s2 = inlined_call_operand.hbm [shape: f32[2,384,256], index: 2, kind: output, shape index: {}]
  %s3 = sld [smem:[#allocation0]]
  $region45: #{tpu_custom_call.1} parent=0
    _
  %s5 = ssub.s32 1, %s3
  %s6 = scalar_select 0, %s5, %s3
  $region1: #{tpu_custom_call.1} parent=0
    #allocation2 [shape = 'u8[393216]{0}', space=vmem, size = 0x60000, scoped, tag = 'input window, operand 1']
    #allocation3 [shape = 's32[2]{0}', space=sflag, size = 0x8, scoped, tag = 'scoped memory for tpu_custom_call.1']
    #allocation4 [shape = 's32[2]{0}', space=sflag, size = 0x8, scoped, tag = 'scoped memory for tpu_custom_call.1']
    #allocation5 [shape = 'u8[393216]{0}', space=vmem, size = 0x60000, scoped, tag = 'output window, operand 0']
    %7 = vsyncpa [#allocation3], 0
    %s8 = scalar_lea.sflag [#allocation3], 1
    %9 = vsyncpa %s8, 0
    %10 = vsyncpa [#allocation4], 0
    %s11 = scalar_lea.sflag [#allocation4], 1
    %12 = vsyncpa %s11, 0
    loop: start=0, step=1, limit=6
    $region2: #{tpu_custom_call.1} parent=1 // loop_pre_header
      _
    $region3: #{tpu_custom_call.1} parent=1 // loop_header
      %s14 = sphi 0, %s18
      %p15 = scmp.ge.s32.totalorder %s14, 6
      %s21 = sphi 0, %s33
      %s22 = sphi 0, %s29
      %s23 = sphi 0, %s21
      %s24 = sphi 0, %s22
      %s25 = sphi 0, %s23
      %s26 = sphi 0, %s24
      %s36 = sphi 0, %s38
      %s39 = sphi 0, %s36
      %s40 = sphi 0, %s39
      %s56 = sphi 0, %s40
      %s64 = sphi 0, %s66
      %s67 = sphi 0, %s64
      %s68 = sphi 0, %s67
      %s84 = sphi 0, %s68
      %s92 = sphi 0, %s94
      %s95 = sphi 0, %s92
      %s96 = sphi 0, %s95
      %s112 = sphi 0, %s96
    $region4: #{tpu_custom_call.1} parent=1 // loop_header_branch
      %17 = sbr.rel (%p15) target = $region8
    $region5: #{tpu_custom_call.1} parent=1 // loop_body
      %s19 = ssub.s32 %s14, 1
      %s20 = ssub.s32 %s14, 2
      %s27 = sadd.s32 1, %s22
      %p28 = scmp.ge.s32.totalorder %s27, 2
      %s29 = scalar_select %p28, 0, %s27
      %s30 = sadd.s32 1, %s21
      %s31 = scalar_select %p28, %s30, %s21
      %p32 = scmp.ge.s32.totalorder %s31, 2
      %s33 = scalar_select %p32, 0, %s31
      %s34 = ssub.s32 %s21, %s33
      %p35 = scmp.eq.s32.totalorder %s34, 0
      %s37 = sadd.s32 %s36, 1
      %s38 = scalar_select %p35, %s36, %s37
      %p41 = pneg %p35
      %p42 = scmp.eq.s32.totalorder %s14, 3
      %p43 = por %p41, %p42
      %p44 = scmp.ne.s32.totalorder %s36, %s39
      %p45 = scmp.eq.s32.totalorder %s14, 0
      %p46 = por %p44, %p45
      %p47 = scmp.ne.s32.totalorder %s36, %s39
      %p48 = scmp.eq.s32.totalorder %s19, 3
      %p49 = por %p47, %p48
      %p50 = scmp.ne.s32.totalorder %s39, %s40
      %p51 = scmp.eq.s32.totalorder %s19, 0
      %p52 = por %p50, %p51
      %p53 = scmp.ne.s32.totalorder %s39, %s40
      %p54 = scmp.eq.s32.totalorder %s20, 3
      %p55 = por %p53, %p54
      %p57 = scmp.ne.s32.totalorder %s40, %s56
      %p58 = scmp.eq.s32.totalorder %s20, 0
      %p59 = por %p57, %p58
      %s60 = ssub.s32 %s21, %s33
      %s61 = ssub.s32 %s22, %s29
      %s62 = sor.u32 %s60, %s61
      %p63 = scmp.eq.s32.totalorder %s62, 0
      %s65 = sadd.s32 %s64, 1
      %s66 = scalar_select %p63, %s64, %s65
      %p69 = pneg %p63
      %p70 = scmp.eq.s32.totalorder %s14, 3
      %p71 = por %p69, %p70
      %p72 = scmp.ne.s32.totalorder %s64, %s67
      %p73 = scmp.eq.s32.totalorder %s14, 0
      %p74 = por %p72, %p73
      %p75 = scmp.ne.s32.totalorder %s64, %s67
      %p76 = scmp.eq.s32.totalorder %s19, 3
      %p77 = por %p75, %p76
      %p78 = scmp.ne.s32.totalorder %s67, %s68
      %p79 = scmp.eq.s32.totalorder %s19, 0
      %p80 = por %p78, %p79
      %p81 = scmp.ne.s32.totalorder %s67, %s68
      %p82 = scmp.eq.s32.totalorder %s20, 3
      %p83 = por %p81, %p82
      %p85 = scmp.ne.s32.totalorder %s68, %s84
      %p86 = scmp.eq.s32.totalorder %s20, 0
      %p87 = por %p85, %p86
      %s88 = ssub.s32 %s21, %s33
      %s89 = ssub.s32 %s22, %s29
      %s90 = sor.u32 %s88, %s89
      %p91 = scmp.eq.s32.totalorder %s90, 0
      %s93 = sadd.s32 %s92, 1
      %s94 = scalar_select %p91, %s92, %s93
      %p97 = pneg %p91
      %p98 = scmp.eq.s32.totalorder %s14, 3
      %p99 = por %p97, %p98
      %p100 = scmp.ne.s32.totalorder %s92, %s95
      %p101 = scmp.eq.s32.totalorder %s14, 0
      %p102 = por %p100, %p101
      %p103 = scmp.ne.s32.totalorder %s92, %s95
      %p104 = scmp.eq.s32.totalorder %s19, 3
      %p105 = por %p103, %p104
      %p106 = scmp.ne.s32.totalorder %s95, %s96
      %p107 = scmp.eq.s32.totalorder %s19, 0
      %p108 = por %p106, %p107
      %p109 = scmp.ne.s32.totalorder %s95, %s96
      %p110 = scmp.eq.s32.totalorder %s20, 3
      %p111 = por %p109, %p110
      %p113 = scmp.ne.s32.totalorder %s96, %s112
      %p114 = scmp.eq.s32.totalorder %s20, 0
      %p115 = por %p113, %p114
      %p116 = scmp.le.s32.totalorder 1, %s14
      %p117 = scmp.lt.s32.totalorder %s14, 5
      %p118 = pnand %p116, %p117
      %p119 = pneg %p118
      // Predicated region
      $region9: #{tpu_custom_call.1} parent=5 // pred_check
        _
      $region10: #{tpu_custom_call.1} parent=5 // pred_check_branch
        %121 = sbr.rel (%p118) target = $region12
      $region11: #{tpu_custom_call.1} parent=5 // pred_region
        %s122 = ssub.s32 %s14, 1
      $region12: #{tpu_custom_call.1} parent=5 // pred_fallthru
        _
      %p123 = scmp.lt.s32.totalorder %s14, 4
      // Predicated region
      $region13: #{tpu_custom_call.1} parent=5 // pred_check
        %p124 = pneg %p123
      $region14: #{tpu_custom_call.1} parent=5 // pred_check_branch
        %126 = sbr.rel (%p124) target = $region16
      $region15: #{tpu_custom_call.1} parent=5 // pred_region
        // Predicated region
        $region17: #{tpu_custom_call.1} parent=15 // pred_check
          %p127 = pneg %p46
        $region18: #{tpu_custom_call.1} parent=15 // pred_check_branch
          %129 = sbr.rel (%p127) target = $region20
        $region19: #{tpu_custom_call.1} parent=15 // pred_region
          %p130 = scmp.lt.s32.totalorder %s21, 1
          %s131 = scalar_select %p130, %s21, 1
          %s132 = smul.addr %s131, 48
          %s133 = smul.addr %s132, 8
          %s134 = scalar_lea.vmem %s0, %s133
        $region20: #{tpu_custom_call.1} parent=15 // pred_fallthru
          _
        // Predicated region
        $region21: #{tpu_custom_call.1} parent=15 // pred_check
          %p135 = pneg %p74
        $region22: #{tpu_custom_call.1} parent=15 // pred_check_branch
          %137 = sbr.rel (%p135) target = $region24
        $region23: #{tpu_custom_call.1} parent=15 // pred_region
          %s138 = sand.u32 %s64, 1
          %s139 = scalar_lea.sflag [#allocation3], %s138
          %s140 = sand.u32 %s64, 1
          %s141 = smul.addr %s140, 384
          %s142 = scalar_lea.vmem [#allocation2], %s141
          %s143 = smul.u32 24, %s22
          %s145 = ssub.s32 6144, 6144
          %146 = vsyncadd %s139, %s145
          %s147 = smul.addr %s143, 2
          %s148 = smul.addr %s21, 96
          %s149 = sadd.s32 %s147, %s148
          %s150 = smul.addr %s149, 128
          %s151 = scalar_lea.hbm %s1, %s150
          %s152 = sshll.u32 %s142, 4
          %s153 = int_to_ptr.vmem [resolvable:$true] %s152
          %158 = dma.hbm_to_vmem [thread:$0]  %s151, 6144, %s153, %s139, 256, 256, 16
        $region24: #{tpu_custom_call.1} parent=15 // pred_fallthru
          _
      $region16: #{tpu_custom_call.1} parent=5 // pred_fallthru
        _
      %p159 = scmp.le.s32.totalorder 1, %s14
      %p160 = scmp.lt.s32.totalorder %s14, 5
      %p161 = pnand %p159, %p160
      %p162 = pneg %p161
      // Predicated region
      $region25: #{tpu_custom_call.1} parent=5 // pred_check
        _
      $region26: #{tpu_custom_call.1} parent=5 // pred_check_branch
        %164 = sbr.rel (%p161) target = $region28
      $region27: #{tpu_custom_call.1} parent=5 // pred_region
        %s165 = ssub.s32 %s14, 1
        %s166 = sand.u32 %s67, 1
        %s167 = scalar_lea.sflag [#allocation3], %s166
        %s168 = sand.u32 %s67, 1
        %s169 = smul.addr %s168, 384
        %s170 = scalar_lea.vmem [#allocation2], %s169
        // Predicated region
        $region29: #{tpu_custom_call.1} parent=27 // pred_check
          %p171 = pneg %p80
        $region30: #{tpu_custom_call.1} parent=27 // pred_check_branch
          %173 = sbr.rel (%p171) target = $region32
        $region31: #{tpu_custom_call.1} parent=27 // pred_region
          %174 = dma.done %s167, 6144
        $region32: #{tpu_custom_call.1} parent=27 // pred_fallthru
          _
        %p175 = scmp.lt.s32.totalorder %s23, 1
        %s176 = scalar_select %p175, %s23, 1
        %s177 = smul.addr %s176, 48
        %s178 = smul.addr %s177, 8
        %s179 = scalar_lea.vmem %s0, %s178
        %p180 = pneg %p52
        %p181 = pneg %p49
        %s182 = sand.u32 %s67, 1
        %s183 = scalar_lea.sflag [#allocation3], %s182
        %s184 = sand.u32 %s67, 1
        %s185 = smul.addr %s184, 384
        %s186 = scalar_lea.vmem [#allocation2], %s185
        %p187 = pneg %p80
        %p188 = pneg %p77
        %p189 = pneg %p108
        %p190 = pneg %p105
        %s191 = sand.u32 %s95, 1
        %s192 = scalar_lea.sflag [#allocation4], %s191
        %s193 = sand.u32 %s95, 1
        %s194 = smul.addr %s193, 384
        %s195 = scalar_lea.vmem [#allocation5], %s194
        %p196 = scmp.lt.s32.totalorder %s23, 1
        %s197 = scalar_select %p196, %s23, 1
        %s198 = smul.addr %s197, 48
        %s199 = smul.addr %s198, 8
        %s200 = scalar_lea.vmem %s0, %s199
        %s201 = smul.u32 24, %s24
        %s202 = smul.u32 24, %s24
        %s203 = smul.u32 %s24, 192
        %s204 = scalar_lea.vmem %s200, %s203
        %v205 = vld [vmem:[%s204] sm:$0xff]
        %v206 = vld [vmem:[%s204 + $0x8] sm:$0xff]
        %v207 = vld [vmem:[%s204 + $0x10] sm:$0xff]
        %v208 = vld [vmem:[%s204 + $0x18] sm:$0xff]
        %v209 = vld [vmem:[%s204 + $0x20] sm:$0xff]
        %v210 = vld [vmem:[%s204 + $0x28] sm:$0xff]
        %v211 = vld [vmem:[%s204 + $0x30] sm:$0xff]
        %v212 = vld [vmem:[%s204 + $0x38] sm:$0xff]
        %v213 = vld [vmem:[%s204 + $0x40] sm:$0xff]
        %v214 = vld [vmem:[%s204 + $0x48] sm:$0xff]
        %v215 = vld [vmem:[%s204 + $0x50] sm:$0xff]
        %v216 = vld [vmem:[%s204 + $0x58] sm:$0xff]
        %v217 = vld [vmem:[%s204 + $0x60] sm:$0xff]
        %v218 = vld [vmem:[%s204 + $0x68] sm:$0xff]
        %v219 = vld [vmem:[%s204 + $0x70] sm:$0xff]
        %v220 = vld [vmem:[%s204 + $0x78] sm:$0xff]
        %v221 = vld [vmem:[%s204 + $0x80] sm:$0xff]
        %v222 = vld [vmem:[%s204 + $0x88] sm:$0xff]
        %v223 = vld [vmem:[%s204 + $0x90] sm:$0xff]
        %v224 = vld [vmem:[%s204 + $0x98] sm:$0xff]
        %v225 = vld [vmem:[%s204 + $0xa0] sm:$0xff]
        %v226 = vld [vmem:[%s204 + $0xa8] sm:$0xff]
        %v227 = vld [vmem:[%s204 + $0xb0] sm:$0xff]
        %v228 = vld [vmem:[%s204 + $0xb8] sm:$0xff]
        %v229 = vld [vmem:[%s170] sm:$0xff]
        %v230 = vld [vmem:[%s170 + $0x8] sm:$0xff]
        %v231 = vld [vmem:[%s170 + $0x10] sm:$0xff]
        %v232 = vld [vmem:[%s170 + $0x18] sm:$0xff]
        %v233 = vld [vmem:[%s170 + $0x20] sm:$0xff]
        %v234 = vld [vmem:[%s170 + $0x28] sm:$0xff]
        %v235 = vld [vmem:[%s170 + $0x30] sm:$0xff]
        %v236 = vld [vmem:[%s170 + $0x38] sm:$0xff]
        %v237 = vld [vmem:[%s170 + $0x40] sm:$0xff]
        %v238 = vld [vmem:[%s170 + $0x48] sm:$0xff]
        %v239 = vld [vmem:[%s170 + $0x50] sm:$0xff]
        %v240 = vld [vmem:[%s170 + $0x58] sm:$0xff]
        %v241 = vld [vmem:[%s170 + $0x60] sm:$0xff]
        %v242 = vld [vmem:[%s170 + $0x68] sm:$0xff]
        %v243 = vld [vmem:[%s170 + $0x70] sm:$0xff]
        %v244 = vld [vmem:[%s170 + $0x78] sm:$0xff]
        %v245 = vld [vmem:[%s170 + $0x80] sm:$0xff]
        %v246 = vld [vmem:[%s170 + $0x88] sm:$0xff]
        %v247 = vld [vmem:[%s170 + $0x90] sm:$0xff]
        %v248 = vld [vmem:[%s170 + $0x98] sm:$0xff]
        %v249 = vld [vmem:[%s170 + $0xa0] sm:$0xff]
        %v250 = vld [vmem:[%s170 + $0xa8] sm:$0xff]
        %v251 = vld [vmem:[%s170 + $0xb0] sm:$0xff]
        %v252 = vld [vmem:[%s170 + $0xb8] sm:$0xff]
        %v253 = vld [vmem:[%s170 + $0xc0] sm:$0xff]
        %v254 = vld [vmem:[%s170 + $0xc8] sm:$0xff]
        %v255 = vld [vmem:[%s170 + $0xd0] sm:$0xff]
        %v256 = vld [vmem:[%s170 + $0xd8] sm:$0xff]
        %v257 = vld [vmem:[%s170 + $0xe0] sm:$0xff]
        %v258 = vld [vmem:[%s170 + $0xe8] sm:$0xff]
        %v259 = vld [vmem:[%s170 + $0xf0] sm:$0xff]
        %v260 = vld [vmem:[%s170 + $0xf8] sm:$0xff]
        %v261 = vld [vmem:[%s170 + $0x100] sm:$0xff]
        %v262 = vld [vmem:[%s170 + $0x108] sm:$0xff]
        %v263 = vld [vmem:[%s170 + $0x110] sm:$0xff]
        %v264 = vld [vmem:[%s170 + $0x118] sm:$0xff]
        %v265 = vld [vmem:[%s170 + $0x120] sm:$0xff]
        %v266 = vld [vmem:[%s170 + $0x128] sm:$0xff]
        %v267 = vld [vmem:[%s170 + $0x130] sm:$0xff]
        %v268 = vld [vmem:[%s170 + $0x138] sm:$0xff]
        %v269 = vld [vmem:[%s170 + $0x140] sm:$0xff]
        %v270 = vld [vmem:[%s170 + $0x148] sm:$0xff]
        %v271 = vld [vmem:[%s170 + $0x150] sm:$0xff]
        %v272 = vld [vmem:[%s170 + $0x158] sm:$0xff]
        %v273 = vld [vmem:[%s170 + $0x160] sm:$0xff]
        %v274 = vld [vmem:[%s170 + $0x168] sm:$0xff]
        %v275 = vld [vmem:[%s170 + $0x170] sm:$0xff]
        %v276 = vld [vmem:[%s170 + $0x178] sm:$0xff]
        %v277 = vadd.f32 %v229, %v230
        %278 = vadd.xlane.f32.xlu0 %v277
        %v279 = vpop.xlane.xlu0 %278
        %v280 = vadd.f32 %v231, %v232
        %281 = vadd.xlane.f32.xlu0 %v280
        %v282 = vpop.xlane.xlu0 %281
        %v283 = vadd.f32 %v233, %v234
        %284 = vadd.xlane.f32.xlu0 %v283
        %v285 = vpop.xlane.xlu0 %284
        %v286 = vadd.f32 %v235, %v236
        %287 = vadd.xlane.f32.xlu0 %v286
        %v288 = vpop.xlane.xlu0 %287
        %v289 = vadd.f32 %v237, %v238
        %290 = vadd.xlane.f32.xlu0 %v289
        %v291 = vpop.xlane.xlu0 %290
        %v292 = vadd.f32 %v239, %v240
        %293 = vadd.xlane.f32.xlu0 %v292
        %v294 = vpop.xlane.xlu0 %293
        %v295 = vadd.f32 %v241, %v242
        %296 = vadd.xlane.f32.xlu0 %v295
        %v297 = vpop.xlane.xlu0 %296
        %v298 = vadd.f32 %v243, %v244
        %299 = vadd.xlane.f32.xlu0 %v298
        %v300 = vpop.xlane.xlu0 %299
        %v301 = vadd.f32 %v245, %v246
        %302 = vadd.xlane.f32.xlu0 %v301
        %v303 = vpop.xlane.xlu0 %302
        %v304 = vadd.f32 %v247, %v248
        %305 = vadd.xlane.f32.xlu0 %v304
        %v306 = vpop.xlane.xlu0 %305
        %v307 = vadd.f32 %v249, %v250
        %308 = vadd.xlane.f32.xlu0 %v307
        %v309 = vpop.xlane.xlu0 %308
        %v310 = vadd.f32 %v251, %v252
        %311 = vadd.xlane.f32.xlu0 %v310
        %v312 = vpop.xlane.xlu0 %311
        %v313 = vadd.f32 %v253, %v254
        %314 = vadd.xlane.f32.xlu0 %v313
        %v315 = vpop.xlane.xlu0 %314
        %v316 = vadd.f32 %v255, %v256
        %317 = vadd.xlane.f32.xlu0 %v316
        %v318 = vpop.xlane.xlu0 %317
        %v319 = vadd.f32 %v257, %v258
        %320 = vadd.xlane.f32.xlu0 %v319
        %v321 = vpop.xlane.xlu0 %320
        %v322 = vadd.f32 %v259, %v260
        %323 = vadd.xlane.f32.xlu0 %v322
        %v324 = vpop.xlane.xlu0 %323
        %v325 = vadd.f32 %v261, %v262
        %326 = vadd.xlane.f32.xlu0 %v325
        %v327 = vpop.xlane.xlu0 %326
        %v328 = vadd.f32 %v263, %v264
        %329 = vadd.xlane.f32.xlu0 %v328
        %v330 = vpop.xlane.xlu0 %329
        %v331 = vadd.f32 %v265, %v266
        %332 = vadd.xlane.f32.xlu0 %v331
        %v333 = vpop.xlane.xlu0 %332
        %v334 = vadd.f32 %v267, %v268
        %335 = vadd.xlane.f32.xlu0 %v334
        %v336 = vpop.xlane.xlu0 %335
        %v337 = vadd.f32 %v269, %v270
        %338 = vadd.xlane.f32.xlu0 %v337
        %v339 = vpop.xlane.xlu0 %338
        %v340 = vadd.f32 %v271, %v272
        %341 = vadd.xlane.f32.xlu0 %v340
        %v342 = vpop.xlane.xlu0 %341
        %v343 = vadd.f32 %v273, %v274
        %344 = vadd.xlane.f32.xlu0 %v343
        %v345 = vpop.xlane.xlu0 %344
        %v346 = vadd.f32 %v275, %v276
        %347 = vadd.xlane.f32.xlu0 %v346
        %v348 = vpop.xlane.xlu0 %347
        %v349 = vrcp.pop 256.0
        %v350 = vmul.f32 %v279, %v349
        %v351 = vmul.f32 %v282, %v349
        %v352 = vmul.f32 %v285, %v349
        %v353 = vmul.f32 %v288, %v349
        %v354 = vmul.f32 %v291, %v349
        %v355 = vmul.f32 %v294, %v349
        %v356 = vmul.f32 %v297, %v349
        %v357 = vmul.f32 %v300, %v349
        %v358 = vmul.f32 %v303, %v349
        %v359 = vmul.f32 %v306, %v349
        %v360 = vmul.f32 %v309, %v349
        %v361 = vmul.f32 %v312, %v349
        %v362 = vmul.f32 %v315, %v349
        %v363 = vmul.f32 %v318, %v349
        %v364 = vmul.f32 %v321, %v349
        %v365 = vmul.f32 %v324, %v349
        %v366 = vmul.f32 %v327, %v349
        %v367 = vmul.f32 %v330, %v349
        %v368 = vmul.f32 %v333, %v349
        %v369 = vmul.f32 %v336, %v349
        %v370 = vmul.f32 %v339, %v349
        %v371 = vmul.f32 %v342, %v349
        %v372 = vmul.f32 %v345, %v349
        %v373 = vmul.f32 %v348, %v349
        %v374 = vsub.f32 %v229, %v350
        %v375 = vsub.f32 %v230, %v350
        %v376 = vsub.f32 %v231, %v351
        %v377 = vsub.f32 %v232, %v351
        %v378 = vsub.f32 %v233, %v352
        %v379 = vsub.f32 %v234, %v352
        %v380 = vsub.f32 %v235, %v353
        %v381 = vsub.f32 %v236, %v353
        %v382 = vsub.f32 %v237, %v354
        %v383 = vsub.f32 %v238, %v354
        %v384 = vsub.f32 %v239, %v355
        %v385 = vsub.f32 %v240, %v355
        %v386 = vsub.f32 %v241, %v356
        %v387 = vsub.f32 %v242, %v356
        %v388 = vsub.f32 %v243, %v357
        %v389 = vsub.f32 %v244, %v357
        %v390 = vsub.f32 %v245, %v358
        %v391 = vsub.f32 %v246, %v358
        %v392 = vsub.f32 %v247, %v359
        %v393 = vsub.f32 %v248, %v359
        %v394 = vsub.f32 %v249, %v360
        %v395 = vsub.f32 %v250, %v360
        %v396 = vsub.f32 %v251, %v361
        %v397 = vsub.f32 %v252, %v361
        %v398 = vsub.f32 %v253, %v362
        %v399 = vsub.f32 %v254, %v362
        %v400 = vsub.f32 %v255, %v363
        %v401 = vsub.f32 %v256, %v363
        %v402 = vsub.f32 %v257, %v364
        %v403 = vsub.f32 %v258, %v364
        %v404 = vsub.f32 %v259, %v365
        %v405 = vsub.f32 %v260, %v365
        %v406 = vsub.f32 %v261, %v366
        %v407 = vsub.f32 %v262, %v366
        %v408 = vsub.f32 %v263, %v367
        %v409 = vsub.f32 %v264, %v367
        %v410 = vsub.f32 %v265, %v368
        %v411 = vsub.f32 %v266, %v368
        %v412 = vsub.f32 %v267, %v369
        %v413 = vsub.f32 %v268, %v369
        %v414 = vsub.f32 %v269, %v370
        %v415 = vsub.f32 %v270, %v370
        %v416 = vsub.f32 %v271, %v371
        %v417 = vsub.f32 %v272, %v371
        %v418 = vsub.f32 %v273, %v372
        %v419 = vsub.f32 %v274, %v372
        %v420 = vsub.f32 %v275, %v373
        %v421 = vsub.f32 %v276, %v373
        %v422 = vmul.f32 %v374, %v374
        %v423 = vmul.f32 %v375, %v375
        %v424 = vmul.f32 %v376, %v376
        %v425 = vmul.f32 %v377, %v377
        %v426 = vmul.f32 %v378, %v378
        %v427 = vmul.f32 %v379, %v379
        %v428 = vmul.f32 %v380, %v380
        %v429 = vmul.f32 %v381, %v381
        %v430 = vmul.f32 %v382, %v382
        %v431 = vmul.f32 %v383, %v383
        %v432 = vmul.f32 %v384, %v384
        %v433 = vmul.f32 %v385, %v385
        %v434 = vmul.f32 %v386, %v386
        %v435 = vmul.f32 %v387, %v387
        %v436 = vmul.f32 %v388, %v388
        %v437 = vmul.f32 %v389, %v389
        %v438 = vmul.f32 %v390, %v390
        %v439 = vmul.f32 %v391, %v391
        %v440 = vmul.f32 %v392, %v392
        %v441 = vmul.f32 %v393, %v393
        %v442 = vmul.f32 %v394, %v394
        %v443 = vmul.f32 %v395, %v395
        %v444 = vmul.f32 %v396, %v396
        %v445 = vmul.f32 %v397, %v397
        %v446 = vmul.f32 %v398, %v398
        %v447 = vmul.f32 %v399, %v399
        %v448 = vmul.f32 %v400, %v400
        %v449 = vmul.f32 %v401, %v401
        %v450 = vmul.f32 %v402, %v402
        %v451 = vmul.f32 %v403, %v403
        %v452 = vmul.f32 %v404, %v404
        %v453 = vmul.f32 %v405, %v405
        %v454 = vmul.f32 %v406, %v406
        %v455 = vmul.f32 %v407, %v407
        %v456 = vmul.f32 %v408, %v408
        %v457 = vmul.f32 %v409, %v409
        %v458 = vmul.f32 %v410, %v410
        %v459 = vmul.f32 %v411, %v411
        %v460 = vmul.f32 %v412, %v412
        %v461 = vmul.f32 %v413, %v413
        %v462 = vmul.f32 %v414, %v414
        %v463 = vmul.f32 %v415, %v415
        %v464 = vmul.f32 %v416, %v416
        %v465 = vmul.f32 %v417, %v417
        %v466 = vmul.f32 %v418, %v418
        %v467 = vmul.f32 %v419, %v419
        %v468 = vmul.f32 %v420, %v420
        %v469 = vmul.f32 %v421, %v421
        %v470 = vadd.f32 %v422, %v423
        %471 = vadd.xlane.f32.xlu0 %v470
        %v472 = vpop.xlane.xlu0 %471
        %v473 = vadd.f32 %v424, %v425
        %474 = vadd.xlane.f32.xlu0 %v473
        %v475 = vpop.xlane.xlu0 %474
        %v476 = vadd.f32 %v426, %v427
        %477 = vadd.xlane.f32.xlu0 %v476
        %v478 = vpop.xlane.xlu0 %477
        %v479 = vadd.f32 %v428, %v429
        %480 = vadd.xlane.f32.xlu0 %v479
        %v481 = vpop.xlane.xlu0 %480
        %v482 = vadd.f32 %v430, %v431
        %483 = vadd.xlane.f32.xlu0 %v482
        %v484 = vpop.xlane.xlu0 %483
        %v485 = vadd.f32 %v432, %v433
        %486 = vadd.xlane.f32.xlu0 %v485
        %v487 = vpop.xlane.xlu0 %486
        %v488 = vadd.f32 %v434, %v435
        %489 = vadd.xlane.f32.xlu0 %v488
        %v490 = vpop.xlane.xlu0 %489
        %v491 = vadd.f32 %v436, %v437
        %492 = vadd.xlane.f32.xlu0 %v491
        %v493 = vpop.xlane.xlu0 %492
        %v494 = vadd.f32 %v438, %v439
        %495 = vadd.xlane.f32.xlu0 %v494
        %v496 = vpop.xlane.xlu0 %495
        %v497 = vadd.f32 %v440, %v441
        %498 = vadd.xlane.f32.xlu0 %v497
        %v499 = vpop.xlane.xlu0 %498
        %v500 = vadd.f32 %v442, %v443
        %501 = vadd.xlane.f32.xlu0 %v500
        %v502 = vpop.xlane.xlu0 %501
        %v503 = vadd.f32 %v444, %v445
        %504 = vadd.xlane.f32.xlu0 %v503
        %v505 = vpop.xlane.xlu0 %504
        %v506 = vadd.f32 %v446, %v447
        %507 = vadd.xlane.f32.xlu0 %v506
        %v508 = vpop.xlane.xlu0 %507
        %v509 = vadd.f32 %v448, %v449
        %510 = vadd.xlane.f32.xlu0 %v509
        %v511 = vpop.xlane.xlu0 %510
        %v512 = vadd.f32 %v450, %v451
        %513 = vadd.xlane.f32.xlu0 %v512
        %v514 = vpop.xlane.xlu0 %513
        %v515 = vadd.f32 %v452, %v453
        %516 = vadd.xlane.f32.xlu0 %v515
        %v517 = vpop.xlane.xlu0 %516
        %v518 = vadd.f32 %v454, %v455
        %519 = vadd.xlane.f32.xlu0 %v518
        %v520 = vpop.xlane.xlu0 %519
        %v521 = vadd.f32 %v456, %v457
        %522 = vadd.xlane.f32.xlu0 %v521
        %v523 = vpop.xlane.xlu0 %522
        %v524 = vadd.f32 %v458, %v459
        %525 = vadd.xlane.f32.xlu0 %v524
        %v526 = vpop.xlane.xlu0 %525
        %v527 = vadd.f32 %v460, %v461
        %528 = vadd.xlane.f32.xlu0 %v527
        %v529 = vpop.xlane.xlu0 %528
        %v530 = vadd.f32 %v462, %v463
        %531 = vadd.xlane.f32.xlu0 %v530
        %v532 = vpop.xlane.xlu0 %531
        %v533 = vadd.f32 %v464, %v465
        %534 = vadd.xlane.f32.xlu0 %v533
        %v535 = vpop.xlane.xlu0 %534
        %v536 = vadd.f32 %v466, %v467
        %537 = vadd.xlane.f32.xlu0 %v536
        %v538 = vpop.xlane.xlu0 %537
        %v539 = vadd.f32 %v468, %v469
        %540 = vadd.xlane.f32.xlu0 %v539
        %v541 = vpop.xlane.xlu0 %540
        %v542 = vmul.f32 %v472, %v349
        %v543 = vmul.f32 %v475, %v349
        %v544 = vmul.f32 %v478, %v349
        %v545 = vmul.f32 %v481, %v349
        %v546 = vmul.f32 %v484, %v349
        %v547 = vmul.f32 %v487, %v349
        %v548 = vmul.f32 %v490, %v349
        %v549 = vmul.f32 %v493, %v349
        %v550 = vmul.f32 %v496, %v349
        %v551 = vmul.f32 %v499, %v349
        %v552 = vmul.f32 %v502, %v349
        %v553 = vmul.f32 %v505, %v349
        %v554 = vmul.f32 %v508, %v349
        %v555 = vmul.f32 %v511, %v349
        %v556 = vmul.f32 %v514, %v349
        %v557 = vmul.f32 %v517, %v349
        %v558 = vmul.f32 %v520, %v349
        %v559 = vmul.f32 %v523, %v349
        %v560 = vmul.f32 %v526, %v349
        %v561 = vmul.f32 %v529, %v349
        %v562 = vmul.f32 %v532, %v349
        %v563 = vmul.f32 %v535, %v349
        %v564 = vmul.f32 %v538, %v349
        %v565 = vmul.f32 %v541, %v349
        %v566 = vmul.f32 %v205, %v205
        %v567 = vmul.f32 %v206, %v206
        %v568 = vmul.f32 %v207, %v207
        %v569 = vmul.f32 %v208, %v208
        %v570 = vmul.f32 %v209, %v209
        %v571 = vmul.f32 %v210, %v210
        %v572 = vmul.f32 %v211, %v211
        %v573 = vmul.f32 %v212, %v212
        %v574 = vmul.f32 %v213, %v213
        %v575 = vmul.f32 %v214, %v214
        %v576 = vmul.f32 %v215, %v215
        %v577 = vmul.f32 %v216, %v216
        %v578 = vmul.f32 %v217, %v217
        %v579 = vmul.f32 %v218, %v218
        %v580 = vmul.f32 %v219, %v219
        %v581 = vmul.f32 %v220, %v220
        %v582 = vmul.f32 %v221, %v221
        %v583 = vmul.f32 %v222, %v222
        %v584 = vmul.f32 %v223, %v223
        %v585 = vmul.f32 %v224, %v224
        %v586 = vmul.f32 %v225, %v225
        %v587 = vmul.f32 %v226, %v226
        %v588 = vmul.f32 %v227, %v227
        %v589 = vmul.f32 %v228, %v228
        %v590 = vmul.f32 %v566, %v542
        %v591 = vmul.f32 %v567, %v543
        %v592 = vmul.f32 %v568, %v544
        %v593 = vmul.f32 %v569, %v545
        %v594 = vmul.f32 %v570, %v546
        %v595 = vmul.f32 %v571, %v547
        %v596 = vmul.f32 %v572, %v548
        %v597 = vmul.f32 %v573, %v549
        %v598 = vmul.f32 %v574, %v550
        %v599 = vmul.f32 %v575, %v551
        %v600 = vmul.f32 %v576, %v552
        %v601 = vmul.f32 %v577, %v553
        %v602 = vmul.f32 %v578, %v554
        %v603 = vmul.f32 %v579, %v555
        %v604 = vmul.f32 %v580, %v556
        %v605 = vmul.f32 %v581, %v557
        %v606 = vmul.f32 %v582, %v558
        %v607 = vmul.f32 %v583, %v559
        %v608 = vmul.f32 %v584, %v560
        %v609 = vmul.f32 %v585, %v561
        %v610 = vmul.f32 %v586, %v562
        %v611 = vmul.f32 %v587, %v563
        %v612 = vmul.f32 %v588, %v564
        %v613 = vmul.f32 %v589, %v565
        %v614 = vadd.f32 %v590, 1e-05
        %v615 = vadd.f32 %v591, 1e-05
        %v616 = vadd.f32 %v592, 1e-05
        %v617 = vadd.f32 %v593, 1e-05
        %v618 = vadd.f32 %v594, 1e-05
        %v619 = vadd.f32 %v595, 1e-05
        %v620 = vadd.f32 %v596, 1e-05
        %v621 = vadd.f32 %v597, 1e-05
        %v622 = vadd.f32 %v598, 1e-05
        %v623 = vadd.f32 %v599, 1e-05
        %v624 = vadd.f32 %v600, 1e-05
        %v625 = vadd.f32 %v601, 1e-05
        %v626 = vadd.f32 %v602, 1e-05
        %v627 = vadd.f32 %v603, 1e-05
        %v628 = vadd.f32 %v604, 1e-05
        %v629 = vadd.f32 %v605, 1e-05
        %v630 = vadd.f32 %v606, 1e-05
        %v631 = vadd.f32 %v607, 1e-05
        %v632 = vadd.f32 %v608, 1e-05
        %v633 = vadd.f32 %v609, 1e-05
        %v634 = vadd.f32 %v610, 1e-05
        %v635 = vadd.f32 %v611, 1e-05
        %v636 = vadd.f32 %v612, 1e-05
        %v637 = vadd.f32 %v613, 1e-05
        %v638 = vrsqrt.pop %v614
        %v639 = vrsqrt.pop %v615
        %v640 = vrsqrt.pop %v616
        %v641 = vrsqrt.pop %v617
        %v642 = vrsqrt.pop %v618
        %v643 = vrsqrt.pop %v619
        %v644 = vrsqrt.pop %v620
        %v645 = vrsqrt.pop %v621
        %v646 = vrsqrt.pop %v622
        %v647 = vrsqrt.pop %v623
        %v648 = vrsqrt.pop %v624
        %v649 = vrsqrt.pop %v625
        %v650 = vrsqrt.pop %v626
        %v651 = vrsqrt.pop %v627
        %v652 = vrsqrt.pop %v628
        %v653 = vrsqrt.pop %v629
        %v654 = vrsqrt.pop %v630
        %v655 = vrsqrt.pop %v631
        %v656 = vrsqrt.pop %v632
        %v657 = vrsqrt.pop %v633
        %v658 = vrsqrt.pop %v634
        %v659 = vrsqrt.pop %v635
        %v660 = vrsqrt.pop %v636
        %v661 = vrsqrt.pop %v637
        %v662 = vmul.f32 %v205, %v638
        %v663 = vmul.f32 %v206, %v639
        %v664 = vmul.f32 %v207, %v640
        %v665 = vmul.f32 %v208, %v641
        %v666 = vmul.f32 %v209, %v642
        %v667 = vmul.f32 %v210, %v643
        %v668 = vmul.f32 %v211, %v644
        %v669 = vmul.f32 %v212, %v645
        %v670 = vmul.f32 %v213, %v646
        %v671 = vmul.f32 %v214, %v647
        %v672 = vmul.f32 %v215, %v648
        %v673 = vmul.f32 %v216, %v649
        %v674 = vmul.f32 %v217, %v650
        %v675 = vmul.f32 %v218, %v651
        %v676 = vmul.f32 %v219, %v652
        %v677 = vmul.f32 %v220, %v653
        %v678 = vmul.f32 %v221, %v654
        %v679 = vmul.f32 %v222, %v655
        %v680 = vmul.f32 %v223, %v656
        %v681 = vmul.f32 %v224, %v657
        %v682 = vmul.f32 %v225, %v658
        %v683 = vmul.f32 %v226, %v659
        %v684 = vmul.f32 %v227, %v660
        %v685 = vmul.f32 %v228, %v661
        %687 = vset.pattern.permute.xlu0 0
        %688 = vperm.xlu0 %687, %v662
        %v689 = vpop.permute.xlu0 %688
        %692 = vset.pattern.permute.xlu0 0
        %693 = vperm.xlu0 %692, %v663
        %v694 = vpop.permute.xlu0 %693
        %697 = vset.pattern.permute.xlu0 0
        %698 = vperm.xlu0 %697, %v664
        %v699 = vpop.permute.xlu0 %698
        %702 = vset.pattern.permute.xlu0 0
        %703 = vperm.xlu0 %702, %v665
        %v704 = vpop.permute.xlu0 %703
        %707 = vset.pattern.permute.xlu0 0
        %708 = vperm.xlu0 %707, %v666
        %v709 = vpop.permute.xlu0 %708
        %712 = vset.pattern.permute.xlu0 0
        %713 = vperm.xlu0 %712, %v667
        %v714 = vpop.permute.xlu0 %713
        %717 = vset.pattern.permute.xlu0 0
        %718 = vperm.xlu0 %717, %v668
        %v719 = vpop.permute.xlu0 %718
        %722 = vset.pattern.permute.xlu0 0
        %723 = vperm.xlu0 %722, %v669
        %v724 = vpop.permute.xlu0 %723
        %727 = vset.pattern.permute.xlu0 0
        %728 = vperm.xlu0 %727, %v670
        %v729 = vpop.permute.xlu0 %728
        %732 = vset.pattern.permute.xlu0 0
        %733 = vperm.xlu0 %732, %v671
        %v734 = vpop.permute.xlu0 %733
        %737 = vset.pattern.permute.xlu0 0
        %738 = vperm.xlu0 %737, %v672
        %v739 = vpop.permute.xlu0 %738
        %742 = vset.pattern.permute.xlu0 0
        %743 = vperm.xlu0 %742, %v673
        %v744 = vpop.permute.xlu0 %743
        %747 = vset.pattern.permute.xlu0 0
        %748 = vperm.xlu0 %747, %v674
        %v749 = vpop.permute.xlu0 %748
        %752 = vset.pattern.permute.xlu0 0
        %753 = vperm.xlu0 %752, %v675
        %v754 = vpop.permute.xlu0 %753
        %757 = vset.pattern.permute.xlu0 0
        %758 = vperm.xlu0 %757, %v676
        %v759 = vpop.permute.xlu0 %758
        %762 = vset.pattern.permute.xlu0 0
        %763 = vperm.xlu0 %762, %v677
        %v764 = vpop.permute.xlu0 %763
        %767 = vset.pattern.permute.xlu0 0
        %768 = vperm.xlu0 %767, %v678
        %v769 = vpop.permute.xlu0 %768
        %772 = vset.pattern.permute.xlu0 0
        %773 = vperm.xlu0 %772, %v679
        %v774 = vpop.permute.xlu0 %773
        %777 = vset.pattern.permute.xlu0 0
        %778 = vperm.xlu0 %777, %v680
        %v779 = vpop.permute.xlu0 %778
        %782 = vset.pattern.permute.xlu0 0
        %783 = vperm.xlu0 %782, %v681
        %v784 = vpop.permute.xlu0 %783
        %787 = vset.pattern.permute.xlu0 0
        %788 = vperm.xlu0 %787, %v682
        %v789 = vpop.permute.xlu0 %788
        %792 = vset.pattern.permute.xlu0 0
        %793 = vperm.xlu0 %792, %v683
        %v794 = vpop.permute.xlu0 %793
        %797 = vset.pattern.permute.xlu0 0
        %798 = vperm.xlu0 %797, %v684
        %v799 = vpop.permute.xlu0 %798
        %802 = vset.pattern.permute.xlu0 0
        %803 = vperm.xlu0 %802, %v685
        %v804 = vpop.permute.xlu0 %803
        %v806 = vmul.f32 %v374, %v689
        %v807 = vmul.f32 %v375, %v689
        %v808 = vmul.f32 %v376, %v694
        %v809 = vmul.f32 %v377, %v694
        %v810 = vmul.f32 %v378, %v699
        %v811 = vmul.f32 %v379, %v699
        %v812 = vmul.f32 %v380, %v704
        %v813 = vmul.f32 %v381, %v704
        %v814 = vmul.f32 %v382, %v709
        %v815 = vmul.f32 %v383, %v709
        %v816 = vmul.f32 %v384, %v714
        %v817 = vmul.f32 %v385, %v714
        %v818 = vmul.f32 %v386, %v719
        %v819 = vmul.f32 %v387, %v719
        %v820 = vmul.f32 %v388, %v724
        %v821 = vmul.f32 %v389, %v724
        %v822 = vmul.f32 %v390, %v729
        %v823 = vmul.f32 %v391, %v729
        %v824 = vmul.f32 %v392, %v734
        %v825 = vmul.f32 %v393, %v734
        %v826 = vmul.f32 %v394, %v739
        %v827 = vmul.f32 %v395, %v739
        %v828 = vmul.f32 %v396, %v744
        %v829 = vmul.f32 %v397, %v744
        %v830 = vmul.f32 %v398, %v749
        %v831 = vmul.f32 %v399, %v749
        %v832 = vmul.f32 %v400, %v754
        %v833 = vmul.f32 %v401, %v754
        %v834 = vmul.f32 %v402, %v759
        %v835 = vmul.f32 %v403, %v759
        %v836 = vmul.f32 %v404, %v764
        %v837 = vmul.f32 %v405, %v764
        %v838 = vmul.f32 %v406, %v769
        %v839 = vmul.f32 %v407, %v769
        %v840 = vmul.f32 %v408, %v774
        %v841 = vmul.f32 %v409, %v774
        %v842 = vmul.f32 %v410, %v779
        %v843 = vmul.f32 %v411, %v779
        %v844 = vmul.f32 %v412, %v784
        %v845 = vmul.f32 %v413, %v784
        %v846 = vmul.f32 %v414, %v789
        %v847 = vmul.f32 %v415, %v789
        %v848 = vmul.f32 %v416, %v794
        %v849 = vmul.f32 %v417, %v794
        %v850 = vmul.f32 %v418, %v799
        %v851 = vmul.f32 %v419, %v799
        %v852 = vmul.f32 %v420, %v804
        %v853 = vmul.f32 %v421, %v804
        %854 = vst [vmem:[%s195] sm:$0xff] %v806
        %855 = vst [vmem:[%s195 + $0x8] sm:$0xff] %v807
        %856 = vst [vmem:[%s195 + $0x10] sm:$0xff] %v808
        %857 = vst [vmem:[%s195 + $0x18] sm:$0xff] %v809
        %858 = vst [vmem:[%s195 + $0x20] sm:$0xff] %v810
        %859 = vst [vmem:[%s195 + $0x28] sm:$0xff] %v811
        %860 = vst [vmem:[%s195 + $0x30] sm:$0xff] %v812
        %861 = vst [vmem:[%s195 + $0x38] sm:$0xff] %v813
        %862 = vst [vmem:[%s195 + $0x40] sm:$0xff] %v814
        %863 = vst [vmem:[%s195 + $0x48] sm:$0xff] %v815
        %864 = vst [vmem:[%s195 + $0x50] sm:$0xff] %v816
        %865 = vst [vmem:[%s195 + $0x58] sm:$0xff] %v817
        %866 = vst [vmem:[%s195 + $0x60] sm:$0xff] %v818
        %867 = vst [vmem:[%s195 + $0x68] sm:$0xff] %v819
        %868 = vst [vmem:[%s195 + $0x70] sm:$0xff] %v820
        %869 = vst [vmem:[%s195 + $0x78] sm:$0xff] %v821
        %870 = vst [vmem:[%s195 + $0x80] sm:$0xff] %v822
        %871 = vst [vmem:[%s195 + $0x88] sm:$0xff] %v823
        %872 = vst [vmem:[%s195 + $0x90] sm:$0xff] %v824
        %873 = vst [vmem:[%s195 + $0x98] sm:$0xff] %v825
        %874 = vst [vmem:[%s195 + $0xa0] sm:$0xff] %v826
        %875 = vst [vmem:[%s195 + $0xa8] sm:$0xff] %v827
        %876 = vst [vmem:[%s195 + $0xb0] sm:$0xff] %v828
        %877 = vst [vmem:[%s195 + $0xb8] sm:$0xff] %v829
        %878 = vst [vmem:[%s195 + $0xc0] sm:$0xff] %v830
        %879 = vst [vmem:[%s195 + $0xc8] sm:$0xff] %v831
        %880 = vst [vmem:[%s195 + $0xd0] sm:$0xff] %v832
        %881 = vst [vmem:[%s195 + $0xd8] sm:$0xff] %v833
        %882 = vst [vmem:[%s195 + $0xe0] sm:$0xff] %v834
        %883 = vst [vmem:[%s195 + $0xe8] sm:$0xff] %v835
        %884 = vst [vmem:[%s195 + $0xf0] sm:$0xff] %v836
        %885 = vst [vmem:[%s195 + $0xf8] sm:$0xff] %v837
        %886 = vst [vmem:[%s195 + $0x100] sm:$0xff] %v838
        %887 = vst [vmem:[%s195 + $0x108] sm:$0xff] %v839
        %888 = vst [vmem:[%s195 + $0x110] sm:$0xff] %v840
        %889 = vst [vmem:[%s195 + $0x118] sm:$0xff] %v841
        %890 = vst [vmem:[%s195 + $0x120] sm:$0xff] %v842
        %891 = vst [vmem:[%s195 + $0x128] sm:$0xff] %v843
        %892 = vst [vmem:[%s195 + $0x130] sm:$0xff] %v844
        %893 = vst [vmem:[%s195 + $0x138] sm:$0xff] %v845
        %894 = vst [vmem:[%s195 + $0x140] sm:$0xff] %v846
        %895 = vst [vmem:[%s195 + $0x148] sm:$0xff] %v847
        %896 = vst [vmem:[%s195 + $0x150] sm:$0xff] %v848
        %897 = vst [vmem:[%s195 + $0x158] sm:$0xff] %v849
        %898 = vst [vmem:[%s195 + $0x160] sm:$0xff] %v850
        %899 = vst [vmem:[%s195 + $0x168] sm:$0xff] %v851
        %900 = vst [vmem:[%s195 + $0x170] sm:$0xff] %v852
        %901 = vst [vmem:[%s195 + $0x178] sm:$0xff] %v853
        %s902 = sand.u32 %s95, 1
        %s903 = scalar_lea.sflag [#allocation4], %s902
        %s904 = sand.u32 %s95, 1
        %s905 = smul.addr %s904, 384
        %s906 = scalar_lea.vmem [#allocation5], %s905
        // Predicated region
        $region33: #{tpu_custom_call.1} parent=27 // pred_check
          %p907 = pneg %p105
        $region34: #{tpu_custom_call.1} parent=27 // pred_check_branch
          %909 = sbr.rel (%p907) target = $region36
        $region35: #{tpu_custom_call.1} parent=27 // pred_region
          %s910 = smul.u32 24, %s24
          %s912 = ssub.s32 6144, 6144
          %913 = vsyncadd %s903, %s912
          %s914 = smul.addr %s910, 2
          %s915 = smul.addr %s23, 96
          %s916 = sadd.s32 %s914, %s915
          %s917 = smul.addr %s916, 128
          %s918 = scalar_lea.hbm %s2, %s917
          %s919 = sshll.u32 %s906, 4
          %s920 = int_to_ptr.vmem [resolvable:$true] %s919
          %925 = dma.vmem_to_hbm [thread:$0]  %s920, 6144, %s918, %s903, 256, 256, 16
        $region36: #{tpu_custom_call.1} parent=27 // pred_fallthru
          _
      $region28: #{tpu_custom_call.1} parent=5 // pred_fallthru
        _
      %p926 = scmp.le.s32.totalorder 2, %s14
      // Predicated region
      $region37: #{tpu_custom_call.1} parent=5 // pred_check
        %p927 = pneg %p926
      $region38: #{tpu_custom_call.1} parent=5 // pred_check_branch
        %929 = sbr.rel (%p927) target = $region40
      $region39: #{tpu_custom_call.1} parent=5 // pred_region
        %s930 = ssub.s32 %s14, 2
        // Predicated region
        $region41: #{tpu_custom_call.1} parent=39 // pred_check
          %p931 = pneg %p111
        $region42: #{tpu_custom_call.1} parent=39 // pred_check_branch
          %933 = sbr.rel (%p931) target = $region44
        $region43: #{tpu_custom_call.1} parent=39 // pred_region
          %s934 = sand.u32 %s96, 1
          %s935 = scalar_lea.sflag [#allocation4], %s934
          %s936 = sand.u32 %s96, 1
          %s937 = smul.addr %s936, 384
          %s938 = scalar_lea.vmem [#allocation5], %s937
          %939 = dma.done %s935, 6144
        $region44: #{tpu_custom_call.1} parent=39 // pred_fallthru
          _
      $region40: #{tpu_custom_call.1} parent=5 // pred_fallthru
        _
    $region6: #{tpu_custom_call.1} parent=1 // loop_footer
      %s18 = sadd.s32 1, %s14
    $region7: #{tpu_custom_call.1} parent=1 // loop_footer_branch
      %13 = sbr.rel target = $region3
    $region8: #{tpu_custom_call.1} parent=1 // loop_exit
      _
    %940 = vsyncpa [#allocation3], 1
    %s941 = scalar_lea.sflag [#allocation3], 1
    %942 = vsyncpa %s941, 1
    %943 = vsyncpa [#allocation4], 1
    %s944 = scalar_lea.sflag [#allocation4], 1
    %945 = vsyncpa %s944, 1

</llo_original>
